<compile_context>
chip_gen: v6e
topology: v6e:2x2x1
jax: 0.10.0
libtpu: 0.0.40
codegen_flags: <defaults>
</compile_context>

<pallas_src>
import functools
import math

import jax
import jax.numpy as jnp
from jax.experimental import pallas as pl
from jax.experimental.pallas import tpu as pltpu

EPS = 1e-5  # F.layer_norm default


# --------------------------- kernel bodies ----------------------------------

def _ln_tile(x_ref, o_ref, w, b, *, sub_rows):
    """Normalize one (row_tile, d_model) block in row sub-chunks.

    Sub-chunking bounds the f32 working slab (instead of a full-tile f32
    copy living in VMEM), which matters on v7x where VPU + ld/st slots are
    close to co-bottleneck with the 3.2 TB/s HBM path.
    """
    row_tile, d = x_ref.shape
    inv_d = 1.0 / d
    n_sub = row_tile // sub_rows

    def body(r0):
        x = x_ref[pl.ds(r0, sub_rows), :].astype(jnp.float32)
        # Two-pass (centered) variance: matches F.layer_norm numerics and
        # avoids E[x^2]-E[x]^2 cancellation; extra VPU pass is hidden under
        # the HBM roofline.
        mean = jnp.sum(x, axis=-1, keepdims=True) * inv_d
        centered = x - mean
        var = jnp.sum(centered * centered, axis=-1, keepdims=True) * inv_d
        inv = jax.lax.rsqrt(var + EPS)  # EUP slot, effectively free
        y = centered * inv * w
        if b is not None:
            y = y + b
        o_ref[pl.ds(r0, sub_rows), :] = y.astype(o_ref.dtype)

    if n_sub == 1:
        body(0)
    else:
        def step(c, carry):
            body(pl.multiple_of(c * sub_rows, sub_rows))
            return carry
        # Short trip counts get unrolled for LLO scheduler visibility.
        jax.lax.fori_loop(0, n_sub, step, 0, unroll=(n_sub <= 8))


def _layernorm_kernel(x_ref, w_ref, b_ref, o_ref, *, sub_rows):
    # Hoist the param casts/broadcast sources out of the sub-chunk loop.
    w = w_ref[...].astype(jnp.float32)
    b = b_ref[...].astype(jnp.float32)
    _ln_tile(x_ref, o_ref, w, b, sub_rows=sub_rows)


def _layernorm_kernel_nobias(x_ref, w_ref, o_ref, *, sub_rows):
    w = w_ref[...].astype(jnp.float32)
    _ln_tile(x_ref, o_ref, w, None, sub_rows=sub_rows)


# ------------------------ tiling heuristics ----------------------------------

def _round_up(v, m):
    return ((v + m - 1) // m) * m


def _vmem_capacity_bytes():
    try:
        return int(pltpu.get_tpu_info().vmem_capacity_bytes)
    except Exception:
        # Generation-aware fallback: 64 MiB per TensorCore on v7x, 128 MiB on
        # v5e/v6e.  Default conservatively to 64 MiB if the kind is unknown.
        try:
            kind = jax.devices()[0].device_kind.lower()
        except Exception:
            kind = ""
        if ("v5" in kind) or ("v6" in kind):
            return 128 << 20
        return 64 << 20


def _pick_row_tile(rows, d_model, itemsize, vmem_bytes):
    """Row tile sized from VMEM with a grid-step floor for pipeline overlap."""
    align = max(8, 32 // itemsize)          # sublane alignment per dtype
    rows_padded = _round_up(rows, align)

    bytes_per_row = 4 * d_model * itemsize  # double-buffered in + out tiles
    budget = int(vmem_bytes * 0.40)         # headroom for temps / params
    # 2048-row cap only on 128-MiB parts (v5e/v6e); 1024 on v7x (64 MiB).
    cap = 2048 if vmem_bytes > (96 << 20) else 1024

    tile = budget // max(bytes_per_row, 1)
    tile = max(align, min(tile, cap, rows_padded))
    tile = (tile // align) * align

    # Grid-step floor: aim for >= 8 blocks (>= 4 per TensorCore on v7x) so
    # the software pipeline has prologue/epilogue to hide, but never shrink
    # below ~512 rows (512-row tiles already sit near the HBM roofline).
    min_steps = 8
    if pl.cdiv(rows, tile) < min_steps:
        shrunk = _round_up(max(pl.cdiv(rows, min_steps), 1), align)
        floor = min(rows_padded, max(align, 512))
        floor = (floor // align) * align
        tile = min(tile, max(floor, shrunk))
    return max(tile, align)


def _pick_sub_rows(row_tile, d_model, itemsize):
    """Row sub-chunk: ~512 KiB f32 working slab, evenly dividing row_tile."""
    align = max(8, 32 // itemsize)
    target = max(align, (512 << 10) // max(4 * d_model, 1))
    target = min(target, 256, row_tile)
    target = max(align, (target // align) * align)
    cand = min(target, row_tile)
    while cand > align and row_tile % cand != 0:
        cand -= align
    if row_tile % cand != 0:
        cand = row_tile
    return cand


def _vmem_limit_bytes(row_tile, sub_rows, d_model, itemsize, vmem_bytes):
    tiles = 4 * row_tile * d_model * itemsize   # double-buffered in + out
    # Mosaic can keep several f32 sub-chunk slabs live (x, centered, squared,
    # scaled) -> budget 6 slabs of the sub-chunk, not the full tile.
    temps = 6 * sub_rows * d_model * 4
    params = 8 * d_model * 4                    # weight/bias copies + casts
    need = tiles + temps + params + (2 << 20)
    # Clamp to ~75% of physical VMEM: leaves headroom for compiler-internal
    # scratch on v7x's 64-MiB TensorCores.
    return int(min(max(need, 16 << 20), int(vmem_bytes * 0.75)))


# ----------------------------- wrapper ---------------------------------------

@functools.partial(jax.jit, static_argnames=("row_tile",))
def layer_norm(x, weight, bias=None, *, row_tile=None):
    """LayerNorm over the last axis of x (any leading dims), like F.layer_norm."""
    d_model = x.shape[-1]
    lead_shape = x.shape[:-1]
    rows = math.prod(lead_shape) if lead_shape else 1

    # Merging leading dims is a free view-style reshape (no HBM copy).
    x2 = x.reshape(rows, d_model)
    w2 = weight.reshape(1, d_model)

    itemsize = jnp.dtype(x.dtype).itemsize
    align = max(8, 32 // itemsize)
    vmem_bytes = _vmem_capacity_bytes()
    if row_tile is None:
        row_tile = _pick_row_tile(rows, d_model, itemsize, vmem_bytes)
    else:
        row_tile = _round_up(int(row_tile), align)
    sub_rows = _pick_sub_rows(row_tile, d_model, itemsize)
    vmem_limit = _vmem_limit_bytes(row_tile, sub_rows, d_model, itemsize, vmem_bytes)

    # No host-side jnp.pad / output slice: cdiv grid, Pallas masks the partial
    # last block (rows are independent, so garbage tail rows never contaminate
    # valid output rows).
    grid = (pl.cdiv(rows, row_tile),)

    # TODO(synk): if production d_model is not a multiple of 128, pad the
    # feature axis (with masked reductions) so output stores stay lane-dense;
    # for the usual d_model % 128 == 0 case the full-axis block is already
    # optimal.
    x_spec = pl.BlockSpec((row_tile, d_model), lambda i: (i, 0))
    p_spec = pl.BlockSpec((1, d_model), lambda i: (0, 0))
    o_spec = pl.BlockSpec((row_tile, d_model), lambda i: (i, 0))

    compiler_params = pltpu.CompilerParams(
        dimension_semantics=("parallel",),
        vmem_limit_bytes=vmem_limit,
    )

    if bias is not None:
        b2 = bias.reshape(1, d_model)
        out = pl.pallas_call(
            functools.partial(_layernorm_kernel, sub_rows=sub_rows),
            out_shape=jax.ShapeDtypeStruct((rows, d_model), x.dtype),
            grid_spec=pltpu.PrefetchScalarGridSpec(
                num_scalar_prefetch=0,
                grid=grid,
                in_specs=[x_spec, p_spec, p_spec],
                out_specs=o_spec,
            ),
            compiler_params=compiler_params,
        )(x2, w2, b2)
    else:
        out = pl.pallas_call(
            functools.partial(_layernorm_kernel_nobias, sub_rows=sub_rows),
            out_shape=jax.ShapeDtypeStruct((rows, d_model), x.dtype),
            grid_spec=pltpu.PrefetchScalarGridSpec(
                num_scalar_prefetch=0,
                grid=grid,
                in_specs=[x_spec, p_spec],
                out_specs=o_spec,
            ),
            compiler_params=compiler_params,
        )(x2, w2)

    return out.reshape(*lead_shape, d_model)


# ------------------------------- test ----------------------------------------

def _reference(x, weight, bias=None):
    mean = jnp.mean(x, axis=-1, keepdims=True)
    var = jnp.mean((x - mean) ** 2, axis=-1, keepdims=True)
    y = (x - mean) / jnp.sqrt(var + EPS) * weight
    if bias is not None:
        y = y + bias
    return y


if __name__ == "__main__":
    key = jax.random.PRNGKey(0)

    # Module init: weight = ones(d_model), bias = ones(d_model) when bias=True.
    batch, seq, d_model = 2, 8, 32
    k1, k2 = jax.random.split(key)
    x = jax.random.normal(k1, (batch, seq, d_model), dtype=jnp.float32)
    weight = jnp.ones((d_model,), dtype=jnp.float32)
    bias = jnp.ones((d_model,), dtype=jnp.float32)

    out = jax.block_until_ready(layer_norm(x, weight, bias))
    ref = _reference(x, weight, bias)
    assert jnp.allclose(out, ref, atol=1e-4, rtol=1e-4), "mismatch vs reference (bias)"

    # Second case: bias=False path; row_tile=16 over rows=24 exercises the
    # multi-step grid with a masked partial last block.
    batch2, seq2 = 3, 8
    x2 = jax.random.normal(k2, (batch2, seq2, d_model), dtype=jnp.float32)
    out2 = jax.block_until_ready(layer_norm(x2, weight, None, row_tile=16))
    ref2 = _reference(x2, weight, None)
    assert jnp.allclose(out2, ref2, atol=1e-4, rtol=1e-4), "mismatch vs reference (no bias)"

    print("KERNEL_OK")
</pallas_src>

<mosaic_0001>
module attributes {stable_mosaic.version = 11 : i64} {
  func.func @_layernorm_kernel(%arg0: i32, %arg1: memref<16x32xf32, #tpu.memory_space<vmem>>, %arg2: memref<1x32xf32, #tpu.memory_space<vmem>>, %arg3: memref<1x32xf32, #tpu.memory_space<vmem>>, %arg4: memref<16x32xf32, #tpu.memory_space<vmem>>) attributes {dimension_semantics = [#tpu.dimension_semantics<parallel>], iteration_bounds = array<i64: 1>, scalar_prefetch = 0 : i64, scratch_operands = 0 : i64, tpu.core_type = #tpu.core_type<tc>, window_params = [{transform_indices = @transform_0, window_bounds = array<i64: 16, 32>}, {pipeline_mode = #tpu.pipeline_mode<synchronous>, transform_indices = @transform_1, window_bounds = array<i64: 1, 32>}, {pipeline_mode = #tpu.pipeline_mode<synchronous>, transform_indices = @transform_2, window_bounds = array<i64: 1, 32>}, {transform_indices = @transform_3, window_bounds = array<i64: 16, 32>}]} {
    %c0 = arith.constant 0 : index
    %c0_0 = arith.constant 0 : index
    %0 = vector.load %arg2[%c0, %c0_0] : memref<1x32xf32, #tpu.memory_space<vmem>>, vector<1x32xf32>
    %c0_1 = arith.constant 0 : index
    %c0_2 = arith.constant 0 : index
    %1 = vector.load %arg3[%c0_1, %c0_2] : memref<1x32xf32, #tpu.memory_space<vmem>>, vector<1x32xf32>
    %c0_3 = arith.constant 0 : index
    %c0_4 = arith.constant 0 : index
    %2 = vector.load %arg1[%c0_3, %c0_4] : memref<16x32xf32, #tpu.memory_space<vmem>>, vector<16x32xf32>
    %cst = arith.constant dense<0.000000e+00> : vector<16xf32>
    %3 = vector.multi_reduction <add>, %2, %cst [1] : vector<16x32xf32> to vector<16xf32>
    %4 = vector.shape_cast %3 : vector<16xf32> to vector<16x1xf32>
    %cst_5 = arith.constant 3.125000e-02 : f32
    %5 = vector.broadcast %cst_5 : f32 to vector<16x1xf32>
    %6 = arith.mulf %4, %5 : vector<16x1xf32>
    %7 = vector.broadcast %6 : vector<16x1xf32> to vector<16x32xf32>
    %8 = arith.subf %2, %7 : vector<16x32xf32>
    %9 = arith.mulf %8, %8 : vector<16x32xf32>
    %cst_6 = arith.constant dense<0.000000e+00> : vector<16xf32>
    %10 = vector.multi_reduction <add>, %9, %cst_6 [1] : vector<16x32xf32> to vector<16xf32>
    %11 = vector.shape_cast %10 : vector<16xf32> to vector<16x1xf32>
    %cst_7 = arith.constant 3.125000e-02 : f32
    %12 = vector.broadcast %cst_7 : f32 to vector<16x1xf32>
    %13 = arith.mulf %11, %12 : vector<16x1xf32>
    %cst_8 = arith.constant 9.99999974E-6 : f32
    %14 = vector.broadcast %cst_8 : f32 to vector<16x1xf32>
    %15 = arith.addf %13, %14 : vector<16x1xf32>
    %16 = math.rsqrt %15 : vector<16x1xf32>
    %17 = vector.broadcast %16 : vector<16x1xf32> to vector<16x32xf32>
    %18 = arith.mulf %8, %17 : vector<16x32xf32>
    %19 = vector.broadcast %0 : vector<1x32xf32> to vector<16x32xf32>
    %20 = arith.mulf %18, %19 : vector<16x32xf32>
    %21 = vector.broadcast %1 : vector<1x32xf32> to vector<16x32xf32>
    %22 = arith.addf %20, %21 : vector<16x32xf32>
    %c0_9 = arith.constant 0 : index
    %c0_10 = arith.constant 0 : index
    %23 = vector.load %arg4[%c0_9, %c0_10] : memref<16x32xf32, #tpu.memory_space<vmem>>, vector<16x32xf32>
    tpu.vector_store %arg4[%c0_9, %c0_10], %22 {strides = array<i32>} : memref<16x32xf32, #tpu.memory_space<vmem>>, vector<16x32xf32>,
    return
  }
  func.func @transform_0(%arg0: i32) -> (i32, i32) {
    %c0_i32 = arith.constant 0 : i32
    %c0_i32_0 = arith.constant 0 : i32
    return %arg0, %c0_i32 : i32, i32
  }
  func.func @transform_1(%arg0: i32) -> (i32, i32) {
    %c0_i32 = arith.constant 0 : i32
    %c0_i32_0 = arith.constant 0 : i32
    %c0_i32_1 = arith.constant 0 : i32
    return %c0_i32, %c0_i32_0 : i32, i32
  }
  func.func @transform_2(%arg0: i32) -> (i32, i32) {
    %c0_i32 = arith.constant 0 : i32
    %c0_i32_0 = arith.constant 0 : i32
    %c0_i32_1 = arith.constant 0 : i32
    return %c0_i32, %c0_i32_0 : i32, i32
  }
  func.func @transform_3(%arg0: i32) -> (i32, i32) {
    %c0_i32 = arith.constant 0 : i32
    %c0_i32_0 = arith.constant 0 : i32
    return %arg0, %c0_i32 : i32, i32
  }
}

</mosaic_0001>

<llo_original>
// kernel: layer_norm.1
$region0: #{layer_norm.1}
  #allocation0 [shape = 'u32[]', space=smem, size = 0x4, offset = 0x4, fixed_abs, tag = 'smem constant byte address 0x4 - core index']
  #allocation1 [shape = 'u32[144,128]{1,0:T(1,128)}', space=vmem, size = 0x12000, scoped, tag = 'internal scratch']
  %s0 = inlined_call_operand.hbm [shape: f32[16,32], index: 0, kind: input, shape index: {}]
  %s1 = inlined_call_operand.vmem [shape: f32[1,32], index: 1, kind: input, shape index: {}]
  %s2 = inlined_call_operand.vmem [shape: f32[1,32], index: 2, kind: input, shape index: {}]
  %s3 = inlined_call_operand.hbm [shape: f32[16,32], index: 3, kind: output, shape index: {}]
  %s4 = sld [smem:[#allocation0]]
  $region26: #{layer_norm.1} parent=0
    _
  %s6 = ssub.s32 1, %s4
  %s7 = scalar_select 0, %s6, %s4
  $region1: #{layer_norm.1} parent=0
    #allocation2 [shape = 'u8[8192]{0}', space=vmem, size = 0x2000, scoped, tag = 'input window, operand 0, single buffered']
    #allocation3 [shape = 's32[1]{0}', space=sflag, size = 0x4, scoped, tag = 'scoped memory for layer_norm.1']
    #allocation4 [shape = 's32[1]{0}', space=sflag, size = 0x4, scoped, tag = 'scoped memory for layer_norm.1']
    #allocation5 [shape = 'u8[8192]{0}', space=vmem, size = 0x2000, scoped, tag = 'output window, operand 0, single buffered']
    %8 = vsyncpa [#allocation3], 0
    %9 = vsyncpa [#allocation4], 0
    // Predicated region
    $region2: #{layer_norm.1} parent=1 // pred_check
      _
    $region3: #{layer_norm.1} parent=1 // pred_check_branch
      %11 = sbr.rel (0) target = $region5
    $region4: #{layer_norm.1} parent=1 // pred_region
      %s13 = ssub.s32 256, 256
      %14 = vsyncadd [#allocation3], %s13
      %s15 = sshll.u32 [#allocation2], 4
      %s16 = int_to_ptr.vmem [resolvable:$true] %s15
      %21 = dma.hbm_to_vmem [thread:$0]  %s0, 256, %s16, [#allocation3], 128, 128, 8
    $region5: #{layer_norm.1} parent=1 // pred_fallthru
      _
    // Predicated region
    $region6: #{layer_norm.1} parent=1 // pred_check
      _
    $region7: #{layer_norm.1} parent=1 // pred_check_branch
      %23 = sbr.rel (0) target = $region9
    $region8: #{layer_norm.1} parent=1 // pred_region
      _
    $region9: #{layer_norm.1} parent=1 // pred_fallthru
      _
    // Predicated region
    $region10: #{layer_norm.1} parent=1 // pred_check
      _
    $region11: #{layer_norm.1} parent=1 // pred_check_branch
      %25 = sbr.rel (0) target = $region13
    $region12: #{layer_norm.1} parent=1 // pred_region
      _
    $region13: #{layer_norm.1} parent=1 // pred_fallthru
      _
    // Predicated region
    $region14: #{layer_norm.1} parent=1 // pred_check
      _
    $region15: #{layer_norm.1} parent=1 // pred_check_branch
      %27 = sbr.rel (0) target = $region17
    $region16: #{layer_norm.1} parent=1 // pred_region
      %28 = dma.done [#allocation3], 256
    $region17: #{layer_norm.1} parent=1 // pred_fallthru
      _
    %v29 = vld [vmem:[%s1] sm:$0x1]
    %v30 = vld [vmem:[%s2] sm:$0x1]
    %v31 = vld [vmem:[#allocation2] sm:$0xff]
    %v32 = vld [vmem:[#allocation2 + $0x8] sm:$0xff]
    %vm33 = vcmask 261120
    %v34 = vsel %vm33, %v31, 0.0
    %35 = vadd.xlane.f32.xlu0 %v34
    %v36 = vpop.xlane.xlu0 %35
    %v37 = vsel %vm33, %v32, 0.0
    %38 = vadd.xlane.f32.xlu0 %v37
    %v39 = vpop.xlane.xlu0 %38
    %v40 = vmul.f32 %v36, 0.03125
    %v41 = vmul.f32 %v39, 0.03125
    %v42 = vsub.f32 %v31, %v40
    %v43 = vsub.f32 %v32, %v41
    %v44 = vmul.f32 %v42, %v42
    %v45 = vmul.f32 %v43, %v43
    %v46 = vsel %vm33, %v44, 0.0
    %47 = vadd.xlane.f32.xlu0 %v46
    %v48 = vpop.xlane.xlu0 %47
    %v49 = vsel %vm33, %v45, 0.0
    %50 = vadd.xlane.f32.xlu0 %v49
    %v51 = vpop.xlane.xlu0 %50
    %v52 = vmul.f32 %v48, 0.03125
    %v53 = vmul.f32 %v51, 0.03125
    %v54 = vadd.f32 %v52, 1e-05
    %v55 = vadd.f32 %v53, 1e-05
    %v56 = vrsqrt.pop %v54
    %v57 = vrsqrt.pop %v55
    %v58 = vmul.f32 %v42, %v56
    %v59 = vmul.f32 %v43, %v57
    %v61 = vlaneseq
    %v62 = vshrl.u32 %v61, 7
    %v63 = vsub.s32 0, %v62
    %v64 = vrot.slane %v29, %v63
    %v66 = vmul.f32 %v58, %v64
    %v67 = vmul.f32 %v59, %v64
    %v69 = vlaneseq
    %v70 = vshrl.u32 %v69, 7
    %v71 = vsub.s32 0, %v70
    %v72 = vrot.slane %v30, %v71
    %v74 = vadd.f32 %v66, %v72
    %v75 = vadd.f32 %v67, %v72
    %76 = vst.msk [vmem:[#allocation5] sm:$0xff] %vm33, %v74
    %77 = vst.msk [vmem:[#allocation5 + $0x8] sm:$0xff] %vm33, %v75
    // Predicated region
    $region18: #{layer_norm.1} parent=1 // pred_check
      _
    $region19: #{layer_norm.1} parent=1 // pred_check_branch
      %79 = sbr.rel (0) target = $region21
    $region20: #{layer_norm.1} parent=1 // pred_region
      %s81 = ssub.s32 256, 256
      %82 = vsyncadd [#allocation4], %s81
      %s83 = sshll.u32 [#allocation5], 4
      %s84 = int_to_ptr.vmem [resolvable:$true] %s83
      %89 = dma.vmem_to_hbm [thread:$0]  %s84, 256, %s3, [#allocation4], 128, 128, 8
    $region21: #{layer_norm.1} parent=1 // pred_fallthru
      _
    // Predicated region
    $region22: #{layer_norm.1} parent=1 // pred_check
      _
    $region23: #{layer_norm.1} parent=1 // pred_check_branch
      %91 = sbr.rel (0) target = $region25
    $region24: #{layer_norm.1} parent=1 // pred_region
      %92 = dma.done [#allocation4], 256
    $region25: #{layer_norm.1} parent=1 // pred_fallthru
      _
    %93 = vsyncpa [#allocation3], 1
    %94 = vsyncpa [#allocation4], 1

</llo_original>
